<compile_context>
chip_gen: v6e
topology: v6e:2x2x1
jax: 0.10.0
libtpu: 0.0.40
codegen_flags: <defaults>
</compile_context>

<pallas_src>
import math
from functools import partial

import numpy as np
import jax
import jax.numpy as jnp
from jax.experimental import pallas as pl
from jax.experimental.pallas import tpu as pltpu

NEG_SLOPE = 0.1
BN_EPS = 1e-5


def _round_up(x, m):
    return ((x + m - 1) // m) * m


def _pad2(a, rows, cols):
    a = jnp.asarray(a)
    return jnp.pad(a, ((0, rows - a.shape[0]), (0, cols - a.shape[1])))


def _vmem_capacity_bytes():
    try:
        return int(pltpu.get_tpu_info().vmem_capacity_bytes)
    except Exception:
        return 64 << 20  # conservative default (v7x per-TensorCore VMEM)


# ----------------------------------------------------------------------------
# Pass 0: xwc = x @ Wc^T (GCN lin), hoisted out of the aggregation loop.
# ----------------------------------------------------------------------------
def _proj_kernel(x_ref, wct_ref, xwc_ref):
    xwc_ref[...] = jnp.dot(x_ref[...], wct_ref[...],
                           preferred_element_type=jnp.float32).astype(xwc_ref.dtype)


# ----------------------------------------------------------------------------
# Pass 1: h = A_hat_tile @ xwc  +  per-shard BN sum / sum-of-squares.
# (Conv bias dropped: cancelled exactly by the BatchNorm mean subtraction.)
# ----------------------------------------------------------------------------
def _agg_stats_kernel(xwc_ref, a_ref, h_ref, sum_ref, sumsq_ref):
    j = pl.program_id(1)

    @pl.when(j == 0)
    def _():
        sum_ref[...] = jnp.zeros_like(sum_ref)
        sumsq_ref[...] = jnp.zeros_like(sumsq_ref)

    h = jnp.dot(a_ref[...], xwc_ref[...], preferred_element_type=jnp.float32)
    h_ref[...] = h.astype(h_ref.dtype)  # bf16 intermediate; stats stay f32

    # Padded rows of A_hat are zero, so they contribute zeros to the statistics.
    ts = jnp.sum(h, axis=0, keepdims=True)
    tss = jnp.sum(h * h, axis=0, keepdims=True)
    sum_ref[...] = sum_ref[...] + jnp.broadcast_to(ts, sum_ref.shape)
    sumsq_ref[...] = sumsq_ref[...] + jnp.broadcast_to(tss, sumsq_ref.shape)


# ----------------------------------------------------------------------------
# Pass 2: BN affine + LeakyReLU + shortcut (x @ Ws^T + bias) + LeakyReLU.
# ----------------------------------------------------------------------------
def _bn_act_shortcut_kernel(h_ref, x_ref, wst_ref, scale_ref, shift_ref, bs_ref, o_ref):
    h = h_ref[...].astype(jnp.float32)
    h = h * scale_ref[...] + shift_ref[...]
    h = jnp.where(h > 0, h, NEG_SLOPE * h)

    # TODO(synk): nn.Dropout(0.1) treated as identity (eval-mode; torch RNG mask not reproduced).

    resid = jnp.dot(x_ref[...], wst_ref[...], preferred_element_type=jnp.float32)
    y = h + resid + bs_ref[...]
    o_ref[...] = jnp.where(y > 0, y, NEG_SLOPE * y)


def residual_block_forward(x, a_hat, wc, bc, ws, bs, gamma, beta):
    """x:[N,Cin], a_hat:[N,N], wc/ws:[Cout,Cin], bc/bs/gamma/beta:[Cout]."""
    del bc  # conv bias is mathematically removed by the training-mode BN mean subtraction
    n, c_in = x.shape
    c_out = wc.shape[0]

    c_in_p = _round_up(c_in, 128)
    c_out_p = _round_up(c_out, 128)
    n_p0 = _round_up(n, 128)

    cap = _vmem_capacity_bytes()
    big_vmem = cap >= (96 << 20)          # v5e/v6e: 128 MiB per TC; v7x: 64 MiB

    # Streamed A_hat tile budget (bf16, double-buffered): larger on 128 MiB parts.
    a_tile_budget = (24 << 20) if big_vmem else (8 << 20)
    tm = max(128, min(1024, ((a_tile_budget // (2 * n_p0)) // 128) * 128))
    tm = min(tm, n_p0)

    # Megacore row split: leading "parallel" axis shards row tiles across the two
    # v7x TensorCores; on single-TC parts it is just a cheap serial outer loop.
    n_splits = 2 if (n_p0 // tm) >= 2 else 1
    n_p = _round_up(n, tm * n_splits)
    inner = n_p // (tm * n_splits)

    # Pass-0/2 row tile: decoupled from pass-1 tm (they are cheap streaming kernels).
    base = tm * n_splits
    n_base = n_p // base
    tm2_cap = 4096 if big_vmem else 2048
    tm2 = base
    for d in range(1, n_base + 1):
        if n_base % d == 0 and base * d <= tm2_cap:
            tm2 = base * d

    reserve = 8 << 20

    def _vmem_limit(est):
        return int(min(max(int(est), 16 << 20), cap - reserve))

    p1_limit = _vmem_limit(1.5 * (2 * tm * n_p * 2            # A_hat tiles (double-buffered)
                                  + 2 * n_p * c_out_p * 2     # xwc resident (safety x2)
                                  + 2 * tm * c_out_p * 2      # h writeback (double-buffered)
                                  + 4 * 8 * n_splits * c_out_p * 4))
    p2_limit = _vmem_limit(1.5 * (2 * tm2 * (2 * c_in_p + 2 * c_out_p + 4 * c_out_p)
                                  + 2 * c_in_p * c_out_p * 2 + 6 * c_out_p * 4))

    # Host-side packing / padding (bf16 MXU operands, f32 accumulation in-kernel).
    xp = _pad2(x, n_p, c_in_p).astype(jnp.bfloat16)
    ap = _pad2(a_hat, n_p, n_p).astype(jnp.bfloat16)
    wct = _pad2(jnp.asarray(wc).T, c_in_p, c_out_p).astype(jnp.bfloat16)
    wst = _pad2(jnp.asarray(ws).T, c_in_p, c_out_p).astype(jnp.bfloat16)
    bsp = _pad2(jnp.asarray(bs).reshape(1, -1), 1, c_out_p).astype(jnp.float32)
    gammap = _pad2(jnp.asarray(gamma).reshape(1, -1), 1, c_out_p).astype(jnp.float32)
    betap = _pad2(jnp.asarray(beta).reshape(1, -1), 1, c_out_p).astype(jnp.float32)

    # ---- Pass 0: xwc = x @ Wc^T (bf16). ----
    xwc = pl.pallas_call(
        _proj_kernel,
        grid=(n_p // tm2,),
        in_specs=[
            pl.BlockSpec((tm2, c_in_p), lambda i: (i, 0)),
            pl.BlockSpec((c_in_p, c_out_p), lambda i: (0, 0)),
        ],
        out_specs=pl.BlockSpec((tm2, c_out_p), lambda i: (i, 0)),
        out_shape=jax.ShapeDtypeStruct((n_p, c_out_p), jnp.bfloat16),
        compiler_params=pltpu.CompilerParams(
            dimension_semantics=("parallel",), vmem_limit_bytes=p2_limit),
    )(xp, wct)

    # ---- Pass 1: aggregation + BN statistics (inner axis is the stats reduction). ----
    h_full, bn_sum, bn_sumsq = pl.pallas_call(
        _agg_stats_kernel,
        grid=(n_splits, inner),
        in_specs=[
            pl.BlockSpec((n_p, c_out_p), lambda s, j: (0, 0)),             # xwc (resident)
            pl.BlockSpec((tm, n_p), lambda s, j: (s * inner + j, 0)),      # A_hat (streamed)
        ],
        out_specs=[
            pl.BlockSpec((tm, c_out_p), lambda s, j: (s * inner + j, 0)),  # h tiles (bf16)
            pl.BlockSpec((8, c_out_p), lambda s, j: (s, 0)),               # per-shard sum
            pl.BlockSpec((8, c_out_p), lambda s, j: (s, 0)),               # per-shard sumsq
        ],
        out_shape=[
            jax.ShapeDtypeStruct((n_p, c_out_p), jnp.bfloat16),
            jax.ShapeDtypeStruct((8 * n_splits, c_out_p), jnp.float32),
            jax.ShapeDtypeStruct((8 * n_splits, c_out_p), jnp.float32),
        ],
        compiler_params=pltpu.CompilerParams(
            dimension_semantics=("parallel", "arbitrary"),
            vmem_limit_bytes=p1_limit),
    )(xwc, ap)

    # ---- Tiny O(C) BN-statistic combine (all 8 rows of each shard block are equal). ----
    total_sum = jnp.sum(bn_sum[0::8, :], axis=0)
    total_sumsq = jnp.sum(bn_sumsq[0::8, :], axis=0)
    inv_n = 1.0 / float(n)
    mean = total_sum * inv_n
    var = jnp.maximum(total_sumsq * inv_n - mean * mean, 0.0)   # biased batch variance
    inv_std = jax.lax.rsqrt(var + BN_EPS)
    scale = (gammap[0] * inv_std).reshape(1, c_out_p)
    shift = (betap[0] - mean * gammap[0] * inv_std).reshape(1, c_out_p)

    # ---- Pass 2: normalize + activations + per-tile shortcut (row-parallel). ----
    out_p = pl.pallas_call(
        _bn_act_shortcut_kernel,
        grid=(n_p // tm2,),
        in_specs=[
            pl.BlockSpec((tm2, c_out_p), lambda i: (i, 0)),     # h tile (bf16)
            pl.BlockSpec((tm2, c_in_p), lambda i: (i, 0)),      # x tile (bf16)
            pl.BlockSpec((c_in_p, c_out_p), lambda i: (0, 0)),  # Ws^T (resident)
            pl.BlockSpec((1, c_out_p), lambda i: (0, 0)),       # BN scale
            pl.BlockSpec((1, c_out_p), lambda i: (0, 0)),       # BN shift
            pl.BlockSpec((1, c_out_p), lambda i: (0, 0)),       # shortcut bias
        ],
        out_specs=pl.BlockSpec((tm2, c_out_p), lambda i: (i, 0)),
        out_shape=jax.ShapeDtypeStruct((n_p, c_out_p), jnp.float32),
        compiler_params=pltpu.CompilerParams(
            dimension_semantics=("parallel",), vmem_limit_bytes=p2_limit),
    )(h_full, xp, wst, scale, shift, bsp)

    return out_p[:n, :c_out]


def build_a_hat(edge_index, num_nodes):
    """Dense propagation matrix replicating the module's forward():
       utils.add_self_loops -> degree^-0.5 norm (passed as edge_weight) ->
       GCNConv gcn_norm with improved=True (fill_value=2.0), add_self_loops=True."""
    row = np.asarray(edge_index[0], dtype=np.int64)
    col = np.asarray(edge_index[1], dtype=np.int64)
    loop = np.arange(num_nodes, dtype=np.int64)

    # forward(): utils.add_self_loops (unconditionally appends self loops)
    row = np.concatenate([row, loop])
    col = np.concatenate([col, loop])

    # deg = degree(edge_index[0]); deg^-0.5 with inf -> 0
    deg = np.bincount(row, minlength=num_nodes).astype(np.float32)
    dinv = np.where(deg > 0, deg.astype(np.float32) ** -0.5, 0.0)
    edge_weight = dinv[row] * dinv[col]            # "norm" passed as edge_weight

    # GCNConv.gcn_norm: add_remaining_self_loops with fill_value=2.0 (improved)
    mask = row != col
    row2 = np.concatenate([row[mask], loop])
    col2 = np.concatenate([col[mask], loop])
    ew2 = np.concatenate([edge_weight[mask],
                          np.full(num_nodes, 2.0, dtype=np.float32)])

    # deg = scatter_add(edge_weight, col)  (flow='source_to_target')
    deg2 = np.zeros(num_nodes, dtype=np.float32)
    np.add.at(deg2, col2, ew2)
    dinv2 = np.where(deg2 > 0, deg2 ** -0.5, 0.0)
    w = dinv2[row2] * ew2 * dinv2[col2]

    # out[target] += w * x_lin[source]  =>  A_hat[target, source] += w
    a_hat = np.zeros((num_nodes, num_nodes), dtype=np.float32)
    np.add.at(a_hat, (col2, row2), w)
    return a_hat


def xavier_uniform(key, shape, gain):
    fan_out, fan_in = shape
    bound = gain * math.sqrt(6.0 / (fan_in + fan_out))
    return jax.random.uniform(key, shape, jnp.float32, -bound, bound)


if __name__ == "__main__":
    N, C_IN, C_OUT, E = 8, 16, 32, 20

    key = jax.random.PRNGKey(0)
    k_x, k_e, k_wc, k_ws = jax.random.split(key, 4)

    x = jax.random.normal(k_x, (N, C_IN), jnp.float32)
    edge_index = np.asarray(jax.random.randint(k_e, (2, E), 0, N))

    # reset_parameters(): conv.lin.weight ~ xavier_uniform(gain=leaky_relu gain),
    # conv.bias = 0, bn.weight = 1, bn.bias = 0, shortcut xavier_uniform(gain=1), bias 0.
    gain = math.sqrt(2.0 / (1.0 + NEG_SLOPE ** 2))
    wc = xavier_uniform(k_wc, (C_OUT, C_IN), gain)
    bc = jnp.zeros((C_OUT,), jnp.float32)
    ws = xavier_uniform(k_ws, (C_OUT, C_IN), 1.0)
    bs = jnp.zeros((C_OUT,), jnp.float32)
    gamma = jnp.ones((C_OUT,), jnp.float32)
    beta = jnp.zeros((C_OUT,), jnp.float32)

    a_hat = jnp.asarray(build_a_hat(edge_index, N))

    out = residual_block_forward(x, a_hat, wc, bc, ws, bs, gamma, beta)
    jax.block_until_ready(out)
    assert out.shape == (N, C_OUT)
    assert bool(jnp.all(jnp.isfinite(out)))
    print("KERNEL_OK")
</pallas_src>

<mosaic_0001>
module attributes {stable_mosaic.version = 11 : i64} {
  func.func @_proj_kernel(%arg0: i32, %arg1: memref<128x128xbf16, #tpu.memory_space<vmem>>, %arg2: memref<128x128xbf16, #tpu.memory_space<vmem>>, %arg3: memref<128x128xbf16, #tpu.memory_space<vmem>>) attributes {dimension_semantics = [#tpu.dimension_semantics<parallel>], iteration_bounds = array<i64: 1>, scalar_prefetch = 0 : i64, scratch_operands = 0 : i64, tpu.core_type = #tpu.core_type<tc>, window_params = [{transform_indices = @transform_0, window_bounds = array<i64: 128, 128>}, {pipeline_mode = #tpu.pipeline_mode<synchronous>, transform_indices = @transform_1, window_bounds = array<i64: 128, 128>}, {transform_indices = @transform_2, window_bounds = array<i64: 128, 128>}]} {
    %c0 = arith.constant 0 : index
    %c0_0 = arith.constant 0 : index
    %0 = vector.load %arg1[%c0, %c0_0] : memref<128x128xbf16, #tpu.memory_space<vmem>>, vector<128x128xbf16>
    %c0_1 = arith.constant 0 : index
    %c0_2 = arith.constant 0 : index
    %1 = vector.load %arg2[%c0_1, %c0_2] : memref<128x128xbf16, #tpu.memory_space<vmem>>, vector<128x128xbf16>
    %cst = arith.constant dense<0.000000e+00> : vector<128x128xf32>
    %2 = tpu.matmul %0, %1, %cst {dimension_numbers = #tpu.dot_dimension_numbers<[1], [0], [0], [1], [0, 0, 1, 1], [], []>} : vector<128x128xbf16>, vector<128x128xbf16>, vector<128x128xf32> -> vector<128x128xf32>
    %3 = arith.truncf %2 : vector<128x128xf32> to vector<128x128xbf16>
    %c0_3 = arith.constant 0 : index
    %c0_4 = arith.constant 0 : index
    %4 = vector.load %arg3[%c0_3, %c0_4] : memref<128x128xbf16, #tpu.memory_space<vmem>>, vector<128x128xbf16>
    tpu.vector_store %arg3[%c0_3, %c0_4], %3 {strides = array<i32>} : memref<128x128xbf16, #tpu.memory_space<vmem>>, vector<128x128xbf16>,
    return
  }
  func.func @transform_0(%arg0: i32) -> (i32, i32) {
    %c0_i32 = arith.constant 0 : i32
    %c0_i32_0 = arith.constant 0 : i32
    return %arg0, %c0_i32 : i32, i32
  }
  func.func @transform_1(%arg0: i32) -> (i32, i32) {
    %c0_i32 = arith.constant 0 : i32
    %c0_i32_0 = arith.constant 0 : i32
    %c0_i32_1 = arith.constant 0 : i32
    return %c0_i32, %c0_i32_0 : i32, i32
  }
  func.func @transform_2(%arg0: i32) -> (i32, i32) {
    %c0_i32 = arith.constant 0 : i32
    %c0_i32_0 = arith.constant 0 : i32
    return %arg0, %c0_i32 : i32, i32
  }
}

</mosaic_0001>

<llo_original>
// kernel: tpu_custom_call.1
$region0: #{tpu_custom_call.1}
  #allocation0 [shape = 'u32[]', space=smem, size = 0x4, offset = 0x4, fixed_abs, tag = 'smem constant byte address 0x4 - core index']
  #allocation1 [shape = 'u32[144,128]{1,0:T(1,128)}', space=vmem, size = 0x12000, scoped, tag = 'internal scratch']
  %s0 = inlined_call_operand.hbm [shape: bf16[128,128], index: 0, kind: input, shape index: {}]
  %s1 = inlined_call_operand.hbm [shape: bf16[128,128], index: 1, kind: input, shape index: {}]
  %s2 = inlined_call_operand.hbm [shape: bf16[128,128], index: 2, kind: output, shape index: {}]
  %s3 = sld [smem:[#allocation0]]
  $region26: #{tpu_custom_call.1} parent=0
    _
  %s5 = ssub.s32 1, %s3
  %s6 = scalar_select 0, %s5, %s3
  $region1: #{tpu_custom_call.1} parent=0
    #allocation2 [shape = 'u8[32768]{0}', space=vmem, size = 0x8000, scoped, tag = 'input window, operand 0, single buffered']
    #allocation3 [shape = 's32[1]{0}', space=sflag, size = 0x4, scoped, tag = 'scoped memory for tpu_custom_call.1']
    #allocation4 [shape = 's32[1]{0}', space=sflag, size = 0x4, scoped, tag = 'scoped memory for tpu_custom_call.1']
    #allocation5 [shape = 'u8[32768]{0}', space=vmem, size = 0x8000, scoped, tag = 'input window, operand 1, single buffered']
    #allocation6 [shape = 's32[1]{0}', space=sflag, size = 0x4, scoped, tag = 'scoped memory for tpu_custom_call.1']
    #allocation7 [shape = 'u8[32768]{0}', space=vmem, size = 0x8000, scoped, tag = 'output window, operand 0, single buffered']
    %7 = vsyncpa [#allocation3], 0
    %8 = vsyncpa [#allocation6], 0
    %9 = vsyncpa [#allocation4], 0
    // Predicated region
    $region2: #{tpu_custom_call.1} parent=1 // pred_check
      _
    $region3: #{tpu_custom_call.1} parent=1 // pred_check_branch
      %11 = sbr.rel (0) target = $region5
    $region4: #{tpu_custom_call.1} parent=1 // pred_region
      %s13 = ssub.s32 1024, 1024
      %14 = vsyncadd [#allocation3], %s13
      %s15 = sshll.u32 [#allocation2], 4
      %s16 = int_to_ptr.vmem [resolvable:$true] %s15
      %21 = dma.hbm_to_vmem [thread:$0]  %s0, 1024, %s16, [#allocation3], 64, 64, 4
    $region5: #{tpu_custom_call.1} parent=1 // pred_fallthru
      _
    // Predicated region
    $region6: #{tpu_custom_call.1} parent=1 // pred_check
      _
    $region7: #{tpu_custom_call.1} parent=1 // pred_check_branch
      %23 = sbr.rel (0) target = $region9
    $region8: #{tpu_custom_call.1} parent=1 // pred_region
      %s25 = ssub.s32 1024, 1024
      %26 = vsyncadd [#allocation6], %s25
      %s27 = sshll.u32 [#allocation5], 4
      %s28 = int_to_ptr.vmem [resolvable:$true] %s27
      %33 = dma.hbm_to_vmem [thread:$0]  %s1, 1024, %s28, [#allocation6], 64, 64, 4
    $region9: #{tpu_custom_call.1} parent=1 // pred_fallthru
      _
    // Predicated region
    $region10: #{tpu_custom_call.1} parent=1 // pred_check
      _
    $region11: #{tpu_custom_call.1} parent=1 // pred_check_branch
      %35 = sbr.rel (0) target = $region13
    $region12: #{tpu_custom_call.1} parent=1 // pred_region
      %36 = dma.done [#allocation3], 1024
    $region13: #{tpu_custom_call.1} parent=1 // pred_fallthru
      _
    // Predicated region
    $region14: #{tpu_custom_call.1} parent=1 // pred_check
      _
    $region15: #{tpu_custom_call.1} parent=1 // pred_check_branch
      %38 = sbr.rel (0) target = $region17
    $region16: #{tpu_custom_call.1} parent=1 // pred_region
      %39 = dma.done [#allocation6], 1024
    $region17: #{tpu_custom_call.1} parent=1 // pred_fallthru
      _
    %v41 = vld [vmem:[#allocation2] sm:$0xf]
    %v42 = vld [vmem:[#allocation2 + $0x4] sm:$0xf]
    %v43 = vld [vmem:[#allocation2 + $0x8] sm:$0xf]
    %v44 = vld [vmem:[#allocation2 + $0xc] sm:$0xf]
    %v45 = vld [vmem:[#allocation2 + $0x10] sm:$0xf]
    %v46 = vld [vmem:[#allocation2 + $0x14] sm:$0xf]
    %v47 = vld [vmem:[#allocation2 + $0x18] sm:$0xf]
    %v48 = vld [vmem:[#allocation2 + $0x1c] sm:$0xf]
    %v49 = vld [vmem:[#allocation2 + $0x20] sm:$0xf]
    %v50 = vld [vmem:[#allocation2 + $0x24] sm:$0xf]
    %v51 = vld [vmem:[#allocation2 + $0x28] sm:$0xf]
    %v52 = vld [vmem:[#allocation2 + $0x2c] sm:$0xf]
    %v53 = vld [vmem:[#allocation2 + $0x30] sm:$0xf]
    %v54 = vld [vmem:[#allocation2 + $0x34] sm:$0xf]
    %v55 = vld [vmem:[#allocation2 + $0x38] sm:$0xf]
    %v56 = vld [vmem:[#allocation2 + $0x3c] sm:$0xf]
    %v57 = vld [vmem:[#allocation5] sm:$0xf]
    %v58 = vld [vmem:[#allocation5 + $0x4] sm:$0xf]
    %v59 = vld [vmem:[#allocation5 + $0x8] sm:$0xf]
    %v60 = vld [vmem:[#allocation5 + $0xc] sm:$0xf]
    %v61 = vld [vmem:[#allocation5 + $0x10] sm:$0xf]
    %v62 = vld [vmem:[#allocation5 + $0x14] sm:$0xf]
    %v63 = vld [vmem:[#allocation5 + $0x18] sm:$0xf]
    %v64 = vld [vmem:[#allocation5 + $0x1c] sm:$0xf]
    %v65 = vld [vmem:[#allocation5 + $0x20] sm:$0xf]
    %v66 = vld [vmem:[#allocation5 + $0x24] sm:$0xf]
    %v67 = vld [vmem:[#allocation5 + $0x28] sm:$0xf]
    %v68 = vld [vmem:[#allocation5 + $0x2c] sm:$0xf]
    %v69 = vld [vmem:[#allocation5 + $0x30] sm:$0xf]
    %v70 = vld [vmem:[#allocation5 + $0x34] sm:$0xf]
    %v71 = vld [vmem:[#allocation5 + $0x38] sm:$0xf]
    %v72 = vld [vmem:[#allocation5 + $0x3c] sm:$0xf]
    %v89 = vunpack.c.l.b16 %v41
    %v90 = vunpack.c.l.b16 %v42
    %v91 = vunpack.c.l.b16 %v43
    %v92 = vunpack.c.l.b16 %v44
    %v93 = vunpack.c.l.b16 %v45
    %v94 = vunpack.c.l.b16 %v46
    %v95 = vunpack.c.l.b16 %v47
    %v96 = vunpack.c.l.b16 %v48
    %v97 = vunpack.c.l.b16 %v49
    %v98 = vunpack.c.l.b16 %v50
    %v99 = vunpack.c.l.b16 %v51
    %v100 = vunpack.c.l.b16 %v52
    %v101 = vunpack.c.l.b16 %v53
    %v102 = vunpack.c.l.b16 %v54
    %v103 = vunpack.c.l.b16 %v55
    %v104 = vunpack.c.l.b16 %v56
    %v105 = vpack.c.b16 %v90, %v89
    %v106 = vpack.c.b16 %v92, %v91
    %v107 = vpack.c.b16 %v94, %v93
    %v108 = vpack.c.b16 %v96, %v95
    %v109 = vpack.c.b16 %v98, %v97
    %v110 = vpack.c.b16 %v100, %v99
    %v111 = vpack.c.b16 %v102, %v101
    %v112 = vpack.c.b16 %v104, %v103
    %v137 = vunpack.c.l.b16 %v57
    %v138 = vunpack.c.l.b16 %v58
    %v139 = vunpack.c.l.b16 %v59
    %v140 = vunpack.c.l.b16 %v60
    %v141 = vunpack.c.l.b16 %v61
    %v142 = vunpack.c.l.b16 %v62
    %v143 = vunpack.c.l.b16 %v63
    %v144 = vunpack.c.l.b16 %v64
    %v145 = vunpack.c.l.b16 %v65
    %v146 = vunpack.c.l.b16 %v66
    %v147 = vunpack.c.l.b16 %v67
    %v148 = vunpack.c.l.b16 %v68
    %v149 = vunpack.c.l.b16 %v69
    %v150 = vunpack.c.l.b16 %v70
    %v151 = vunpack.c.l.b16 %v71
    %v152 = vunpack.c.l.b16 %v72
    %v153 = vpack.c.b16 %v138, %v137
    %v154 = vpack.c.b16 %v140, %v139
    %v155 = vpack.c.b16 %v142, %v141
    %v156 = vpack.c.b16 %v144, %v143
    %v157 = vpack.c.b16 %v146, %v145
    %v158 = vpack.c.b16 %v148, %v147
    %v159 = vpack.c.b16 %v150, %v149
    %v160 = vpack.c.b16 %v152, %v151
    %169 = vmatprep.subr.bf16.mxu0 0
    %170 = vmatpush1.bf16.msra.mxu0 %v160
    %171 = vmatprep.subr.bf16.mxu0 0
    %172 = vmatpush1.bf16.msra.mxu0 %v159
    %173 = vmatprep.subr.bf16.mxu0 0
    %174 = vmatpush1.bf16.msra.mxu0 %v158
    %175 = vmatprep.subr.bf16.mxu0 0
    %176 = vmatpush1.bf16.msra.mxu0 %v157
    %177 = vmatprep.subr.bf16.mxu0 0
    %178 = vmatpush1.bf16.msra.mxu0 %v156
    %179 = vmatprep.subr.bf16.mxu0 0
    %180 = vmatpush1.bf16.msra.mxu0 %v155
    %181 = vmatprep.subr.bf16.mxu0 0
    %182 = vmatpush1.bf16.msra.mxu0 %v154
    %183 = vmatprep.subr.bf16.mxu0 0
    %184 = vmatpush1.bf16.msra.mxu0 %v153
    %185 = vmatprep.subr.bf16.mxu0 0
    %186 = vmatpush2.bf16.msra.mxu0 0
    %187 = vmatprep.subr.bf16.mxu0 0
    %188 = vmatpush2.bf16.msra.mxu0 0
    %189 = vmatprep.subr.bf16.mxu0 0
    %190 = vmatpush2.bf16.msra.mxu0 0
    %191 = vmatprep.subr.bf16.mxu0 0
    %192 = vmatpush2.bf16.msra.mxu0 0
    %193 = vmatprep.subr.bf16.mxu0 0
    %194 = vmatpush2.bf16.msra.mxu0 0
    %195 = vmatprep.subr.bf16.mxu0 0
    %196 = vmatpush2.bf16.msra.mxu0 0
    %197 = vmatprep.subr.bf16.mxu0 0
    %198 = vmatpush2.bf16.msra.mxu0 0
    %199 = vmatprep.subr.bf16.mxu0 0
    %200 = vmatpush2.bf16.msra.mxu0 0
    %201 = vmatprep.mubr.bf16.mxu0 0
    %202 = vmatmul.mubr.bf16.gmra.mxu0 %v105
    %v203 = vpop.f32.mrf.mxu0
    %v204 = vadd.f32 0.0, %v203
    %v205 = vpop.f32.mrf.mxu0
    %v206 = vpop.f32.mrf.mxu0
    %v207 = vadd.f32 0.0, %v206
    %v208 = vpop.f32.mrf.mxu0
    %209 = vmatprep.mubr.bf16.mxu0 0
    %210 = vmatmul.mubr.bf16.gmra.mxu0 %v106
    %v211 = vpop.f32.mrf.mxu0
    %v212 = vadd.f32 0.0, %v211
    %v213 = vpop.f32.mrf.mxu0
    %v214 = vpop.f32.mrf.mxu0
    %v215 = vadd.f32 0.0, %v214
    %v216 = vpop.f32.mrf.mxu0
    %217 = vmatprep.mubr.bf16.mxu0 0
    %218 = vmatmul.mubr.bf16.gmra.mxu0 %v107
    %v219 = vpop.f32.mrf.mxu0
    %v220 = vadd.f32 0.0, %v219
    %v221 = vpop.f32.mrf.mxu0
    %v222 = vpop.f32.mrf.mxu0
    %v223 = vadd.f32 0.0, %v222
    %v224 = vpop.f32.mrf.mxu0
    %225 = vmatprep.mubr.bf16.mxu0 0
    %226 = vmatmul.mubr.bf16.gmra.mxu0 %v108
    %v227 = vpop.f32.mrf.mxu0
    %v228 = vadd.f32 0.0, %v227
    %v229 = vpop.f32.mrf.mxu0
    %v230 = vpop.f32.mrf.mxu0
    %v231 = vadd.f32 0.0, %v230
    %v232 = vpop.f32.mrf.mxu0
    %233 = vmatprep.mubr.bf16.mxu0 0
    %234 = vmatmul.mubr.bf16.gmra.mxu0 %v109
    %v235 = vpop.f32.mrf.mxu0
    %v236 = vadd.f32 0.0, %v235
    %v237 = vpop.f32.mrf.mxu0
    %v238 = vpop.f32.mrf.mxu0
    %v239 = vadd.f32 0.0, %v238
    %v240 = vpop.f32.mrf.mxu0
    %241 = vmatprep.mubr.bf16.mxu0 0
    %242 = vmatmul.mubr.bf16.gmra.mxu0 %v110
    %v243 = vpop.f32.mrf.mxu0
    %v244 = vadd.f32 0.0, %v243
    %v245 = vpop.f32.mrf.mxu0
    %v246 = vpop.f32.mrf.mxu0
    %v247 = vadd.f32 0.0, %v246
    %v248 = vpop.f32.mrf.mxu0
    %249 = vmatprep.mubr.bf16.mxu0 0
    %250 = vmatmul.mubr.bf16.gmra.mxu0 %v111
    %v251 = vpop.f32.mrf.mxu0
    %v252 = vadd.f32 0.0, %v251
    %v253 = vpop.f32.mrf.mxu0
    %v254 = vpop.f32.mrf.mxu0
    %v255 = vadd.f32 0.0, %v254
    %v256 = vpop.f32.mrf.mxu0
    %257 = vmatprep.mubr.bf16.mxu0 0
    %258 = vmatmul.mubr.bf16.gmra.mxu0 %v112
    %v259 = vpop.f32.mrf.mxu0
    %v260 = vadd.f32 0.0, %v259
    %v261 = vpop.f32.mrf.mxu0
    %v262 = vpop.f32.mrf.mxu0
    %v263 = vadd.f32 0.0, %v262
    %v264 = vpop.f32.mrf.mxu0
    %265 = vdwg.mxu0
    %v266 = vpack.c.bf16 %v207, %v204
    %v267 = vpack.c.bf16 %v215, %v212
    %v268 = vpack.c.bf16 %v223, %v220
    %v269 = vpack.c.bf16 %v231, %v228
    %v270 = vpack.c.bf16 %v239, %v236
    %v271 = vpack.c.bf16 %v247, %v244
    %v272 = vpack.c.bf16 %v255, %v252
    %v273 = vpack.c.bf16 %v263, %v260
    %v282 = vunpack.c.l.b16 %v266
    %v283 = vunpack.c.h.b16 %v266
    %v284 = vunpack.c.l.b16 %v267
    %v285 = vunpack.c.h.b16 %v267
    %v286 = vunpack.c.l.b16 %v268
    %v287 = vunpack.c.h.b16 %v268
    %v288 = vunpack.c.l.b16 %v269
    %v289 = vunpack.c.h.b16 %v269
    %v290 = vunpack.c.l.b16 %v270
    %v291 = vunpack.c.h.b16 %v270
    %v292 = vunpack.c.l.b16 %v271
    %v293 = vunpack.c.h.b16 %v271
    %v294 = vunpack.c.l.b16 %v272
    %v295 = vunpack.c.h.b16 %v272
    %v296 = vunpack.c.l.b16 %v273
    %v297 = vunpack.c.h.b16 %v273
    %v298 = vpack.c.b16 %v282, %v282
    %v299 = vpack.c.b16 %v283, %v283
    %v300 = vpack.c.b16 %v284, %v284
    %v301 = vpack.c.b16 %v285, %v285
    %v302 = vpack.c.b16 %v286, %v286
    %v303 = vpack.c.b16 %v287, %v287
    %v304 = vpack.c.b16 %v288, %v288
    %v305 = vpack.c.b16 %v289, %v289
    %v306 = vpack.c.b16 %v290, %v290
    %v307 = vpack.c.b16 %v291, %v291
    %v308 = vpack.c.b16 %v292, %v292
    %v309 = vpack.c.b16 %v293, %v293
    %v310 = vpack.c.b16 %v294, %v294
    %v311 = vpack.c.b16 %v295, %v295
    %v312 = vpack.c.b16 %v296, %v296
    %v313 = vpack.c.b16 %v297, %v297
    %330 = vst [vmem:[#allocation7] sm:$0xf] %v298
    %331 = vst [vmem:[#allocation7 + $0x4] sm:$0xf] %v299
    %332 = vst [vmem:[#allocation7 + $0x8] sm:$0xf] %v300
    %333 = vst [vmem:[#allocation7 + $0xc] sm:$0xf] %v301
    %334 = vst [vmem:[#allocation7 + $0x10] sm:$0xf] %v302
    %335 = vst [vmem:[#allocation7 + $0x14] sm:$0xf] %v303
    %336 = vst [vmem:[#allocation7 + $0x18] sm:$0xf] %v304
    %337 = vst [vmem:[#allocation7 + $0x1c] sm:$0xf] %v305
    %338 = vst [vmem:[#allocation7 + $0x20] sm:$0xf] %v306
    %339 = vst [vmem:[#allocation7 + $0x24] sm:$0xf] %v307
    %340 = vst [vmem:[#allocation7 + $0x28] sm:$0xf] %v308
    %341 = vst [vmem:[#allocation7 + $0x2c] sm:$0xf] %v309
    %342 = vst [vmem:[#allocation7 + $0x30] sm:$0xf] %v310
    %343 = vst [vmem:[#allocation7 + $0x34] sm:$0xf] %v311
    %344 = vst [vmem:[#allocation7 + $0x38] sm:$0xf] %v312
    %345 = vst [vmem:[#allocation7 + $0x3c] sm:$0xf] %v313
    // Predicated region
    $region18: #{tpu_custom_call.1} parent=1 // pred_check
      _
    $region19: #{tpu_custom_call.1} parent=1 // pred_check_branch
      %347 = sbr.rel (0) target = $region21
    $region20: #{tpu_custom_call.1} parent=1 // pred_region
      %s349 = ssub.s32 1024, 1024
      %350 = vsyncadd [#allocation4], %s349
      %s351 = sshll.u32 [#allocation7], 4
      %s352 = int_to_ptr.vmem [resolvable:$true] %s351
      %357 = dma.vmem_to_hbm [thread:$0]  %s352, 1024, %s2, [#allocation4], 64, 64, 4
    $region21: #{tpu_custom_call.1} parent=1 // pred_fallthru
      _
    // Predicated region
    $region22: #{tpu_custom_call.1} parent=1 // pred_check
      _
    $region23: #{tpu_custom_call.1} parent=1 // pred_check_branch
      %359 = sbr.rel (0) target = $region25
    $region24: #{tpu_custom_call.1} parent=1 // pred_region
      %360 = dma.done [#allocation4], 1024
    $region25: #{tpu_custom_call.1} parent=1 // pred_fallthru
      _
    %361 = vsyncpa [#allocation3], 1
    %362 = vsyncpa [#allocation6], 1
    %363 = vsyncpa [#allocation4], 1

</llo_original>
